<compile_context>
chip_gen: v7x
topology: tpu7x:2x2x1
jax: 0.10.0
libtpu: 0.0.40
codegen_flags: <defaults>
</compile_context>

<pallas_src>
import functools

import jax
import jax.numpy as jnp
from jax.experimental import pallas as pl
from jax.experimental.pallas import tpu as pltpu

LANE = 128
SUBLANE = 8


# ---------------------------------------------------------------------------
# Kernels
# ---------------------------------------------------------------------------
def mlp_kernel(x_ref, w1, b1, w2, b2, w3, b3, out_ref):
    """3-layer MLP (Linear-ReLU-Linear-ReLU-Linear) on one row tile.

    Weights are MXU operand dtype (bf16 by default), accumulation and biases
    are f32, and the tile output is stored in f32 (no extra rounding before
    the final contraction)."""
    cd = w1.dtype
    x = x_ref[...].astype(cd)
    h = jnp.dot(x, w1[...], preferred_element_type=jnp.float32) + b1[...]
    h = jnp.maximum(h, 0.0).astype(cd)
    h = jnp.dot(h, w2[...], preferred_element_type=jnp.float32) + b2[...]
    h = jnp.maximum(h, 0.0).astype(cd)
    h = jnp.dot(h, w3[...], preferred_element_type=jnp.float32) + b3[...]
    out_ref[...] = h.astype(out_ref.dtype)


def outer_product_kernel(bias_ref, a_ref, bt_ref, out_ref):
    """One (TM, TN) output tile of  A @ B^T + bias.

    a_ref:  (TM, K) f32 tile of branch_out
    bt_ref: (K, TN) f32 tile of trunk_out already transposed -> canonical matmul
    bias_ref: (1,) f32 scalar in SMEM."""
    acc = jnp.dot(a_ref[...], bt_ref[...], preferred_element_type=jnp.float32)
    out_ref[...] = (acc + bias_ref[0]).astype(out_ref.dtype)


# ---------------------------------------------------------------------------
# Host-side helpers
# ---------------------------------------------------------------------------
def _round_up(x, m):
    return ((x + m - 1) // m) * m


def _pad2d(x, rows, cols):
    return jnp.pad(x, ((0, rows - x.shape[0]), (0, cols - x.shape[1])))


def _vmem_capacity_bytes():
    try:
        return int(pltpu.get_tpu_info().vmem_capacity_bytes)
    except Exception:
        return 64 * 1024 * 1024          # conservative fallback (v7x per-TC VMEM)


def _needed_vmem_bytes(tm, tn, kp, out_bytes):
    a = 2 * tm * kp * 4                  # double-buffered branch tile (f32)
    b = 2 * kp * tn * 4                  # double-buffered trunk tile  (f32)
    o = 2 * tm * tn * out_bytes          # double-buffered output tile
    acc = tm * tn * 4                    # f32 dot result before the final cast
    return a + b + o + acc


def _choose_tiles(nb, nt, kp, block_m, block_n, out_dtype):
    """Pick lane-dense output tiles as large as the chip generation allows."""
    out_bytes = jnp.dtype(out_dtype).itemsize
    budget = (_vmem_capacity_bytes() * 3) // 4     # headroom for compiler scratch
    tm = min(_round_up(block_m, SUBLANE), _round_up(nb, SUBLANE))
    tn = min(_round_up(block_n, LANE), _round_up(nt, LANE))
    while _needed_vmem_bytes(tm, tn, kp, out_bytes) > budget:
        if tn > LANE:
            tn = max(LANE, _round_up(tn // 2, LANE))
        elif tm > SUBLANE:
            tm = max(SUBLANE, _round_up(tm // 2, SUBLANE))
        else:
            break
    needed = _needed_vmem_bytes(tm, tn, kp, out_bytes)
    vmem_limit = int(min(max(needed + (8 << 20), 32 << 20), budget))
    return tm, tn, vmem_limit


def prepare_params(params, compute_dtype=jnp.bfloat16):
    """Pad hidden/output feature dims to lane (128) multiples and cast weight
    matrices to the MXU operand dtype (biases stay f32).  Zero padding is
    exact: padded hidden units are ReLU(0)=0 and padded P columns of both
    branch_out and trunk_out are 0, contributing nothing to the final dot.
    Call ONCE and reuse (hoisted out of the per-call jitted forward)."""
    hid = params["bw1"].shape[1]
    out_dim = params["bw3"].shape[1]
    hp = _round_up(hid, LANE)
    pp = _round_up(out_dim, LANE)
    prepared = {}
    for net in ("b", "t"):
        din = params[f"{net}w1"].shape[0]
        prepared[f"{net}w1"] = _pad2d(params[f"{net}w1"], din, hp).astype(compute_dtype)
        prepared[f"{net}b1"] = _pad2d(params[f"{net}b1"], 1, hp).astype(jnp.float32)
        prepared[f"{net}w2"] = _pad2d(params[f"{net}w2"], hp, hp).astype(compute_dtype)
        prepared[f"{net}b2"] = _pad2d(params[f"{net}b2"], 1, hp).astype(jnp.float32)
        prepared[f"{net}w3"] = _pad2d(params[f"{net}w3"], hp, pp).astype(compute_dtype)
        prepared[f"{net}b3"] = _pad2d(params[f"{net}b3"], 1, pp).astype(jnp.float32)
    prepared["bias"] = params["bias"].reshape((1,)).astype(jnp.float32)
    return prepared


def _run_mlp(x_padded, w1, b1, w2, b2, w3, b3, row_tile):
    """Row-tiled 3-layer MLP; weights/biases stay VMEM-resident across steps."""
    n_p, din = x_padded.shape
    pp = w3.shape[1]

    def resident(arr):
        return pl.BlockSpec(arr.shape, lambda i: (0,) * arr.ndim)

    return pl.pallas_call(
        mlp_kernel,
        out_shape=jax.ShapeDtypeStruct((n_p, pp), jnp.float32),
        grid=(n_p // row_tile,),
        in_specs=[pl.BlockSpec((row_tile, din), lambda i: (i, 0)),
                  resident(w1), resident(b1), resident(w2), resident(b2),
                  resident(w3), resident(b3)],
        out_specs=pl.BlockSpec((row_tile, pp), lambda i: (i, 0)),
        compiler_params=pltpu.CompilerParams(
            dimension_semantics=("parallel",)),
    )(x_padded, w1, b1, w2, b2, w3, b3)


@functools.partial(jax.jit,
                   static_argnames=("tm", "tn", "out_dtype", "vmem_limit_bytes"))
def _forward_impl(branch_input, trunk_input, prepared, *, tm, tn,
                  out_dtype, vmem_limit_bytes):
    nb = branch_input.shape[0]
    nt = trunk_input.shape[0]
    kp = prepared["bw3"].shape[1]              # padded P (multiple of 128)
    nb_p = _round_up(nb, tm)
    nt_p = _round_up(nt, tn)

    bx = jnp.pad(branch_input.astype(jnp.float32), ((0, nb_p - nb), (0, 0)))
    tx = jnp.pad(trunk_input.astype(jnp.float32), ((0, nt_p - nt), (0, 0)))

    # Stage 1: branch/trunk MLPs, each computed exactly ONCE (no per-output-
    # tile recomputation).  MLP row tiles match the outer tiles so no extra
    # re-padding is needed between the two stages.
    branch_out = _run_mlp(bx, prepared["bw1"], prepared["bb1"], prepared["bw2"],
                          prepared["bb2"], prepared["bw3"], prepared["bb3"], tm)
    trunk_out = _run_mlp(tx, prepared["tw1"], prepared["tb1"], prepared["tw2"],
                         prepared["tb2"], prepared["tw3"], prepared["tb3"], tn)

    # One small transpose outside the kernel so the main contraction is a
    # canonical (TM,K) x (K,TN) matmul (no in-kernel relayout / A@B^T form).
    trunk_t = trunk_out.T                      # [kp, nt_p] f32

    # Stage 2: tiled branch_out @ trunk_out.T + bias with large, lane-dense
    # output tiles; both grid axes parallel (megacore / dual-TC sharding).
    out = pl.pallas_call(
        outer_product_kernel,
        out_shape=jax.ShapeDtypeStruct((nb_p, nt_p), out_dtype),
        grid=(nb_p // tm, nt_p // tn),
        in_specs=[pl.BlockSpec(memory_space=pltpu.MemorySpace.SMEM),  # scalar bias
                  pl.BlockSpec((tm, kp), lambda i, j: (i, 0)),
                  pl.BlockSpec((kp, tn), lambda i, j: (0, j))],
        out_specs=pl.BlockSpec((tm, tn), lambda i, j: (i, j)),
        compiler_params=pltpu.CompilerParams(
            dimension_semantics=("parallel", "parallel"),
            vmem_limit_bytes=vmem_limit_bytes),
    )(prepared["bias"], branch_out, trunk_t)

    return out[:nb, :nt]


def simple_deeponet_forward(branch_input, trunk_input, prepared, *,
                            block_m=512, block_n=2048, out_dtype=jnp.float32):
    """prepared: output of prepare_params(params). out_dtype=jnp.bfloat16
    halves output writeback traffic if downstream tolerates it."""
    nb = branch_input.shape[0]
    nt = trunk_input.shape[0]
    kp = prepared["bw3"].shape[1]
    tm, tn, vmem_limit = _choose_tiles(nb, nt, kp, block_m, block_n, out_dtype)
    return _forward_impl(branch_input, trunk_input, prepared,
                         tm=tm, tn=tn, out_dtype=out_dtype,
                         vmem_limit_bytes=vmem_limit)


# ---------------------------------------------------------------------------
# Deterministic init + references
# ---------------------------------------------------------------------------
def init_params(key, branch_input_dim, trunk_input_dim, hidden_dim, output_dim):
    """Synthetic init; shapes match nn.Linear layers (weights pre-transposed)."""
    dims_branch = [(branch_input_dim, hidden_dim),
                   (hidden_dim, hidden_dim),
                   (hidden_dim, output_dim)]
    dims_trunk = [(trunk_input_dim, hidden_dim),
                  (hidden_dim, hidden_dim),
                  (hidden_dim, output_dim)]
    params = {}
    keys = jax.random.split(key, 12)
    k = 0
    for prefix, dims in (("b", dims_branch), ("t", dims_trunk)):
        for i, (din, dout) in enumerate(dims, start=1):
            scale = 1.0 / jnp.sqrt(jnp.float32(din))
            params[f"{prefix}w{i}"] = (
                jax.random.uniform(keys[k], (din, dout), jnp.float32,
                                   minval=-1.0, maxval=1.0) * scale)
            k += 1
            params[f"{prefix}b{i}"] = (
                jax.random.uniform(keys[k], (1, dout), jnp.float32,
                                   minval=-1.0, maxval=1.0) * scale)
            k += 1
    params["bias"] = jnp.zeros((1,), jnp.float32)  # nn.Parameter(torch.zeros(1))
    return params


def reference_forward(branch_input, trunk_input, params,
                      compute_dtype=jnp.float32):
    """Plain-JAX reference; compute_dtype mirrors the kernel's MLP operand
    dtype (the final contraction is f32 in both)."""
    cd = compute_dtype

    def mlp(x, w1, b1, w2, b2, w3, b3):
        h = jnp.dot(x.astype(cd), w1.astype(cd),
                    preferred_element_type=jnp.float32) + b1
        h = jnp.maximum(h, 0.0)
        h = jnp.dot(h.astype(cd), w2.astype(cd),
                    preferred_element_type=jnp.float32) + b2
        h = jnp.maximum(h, 0.0)
        h = jnp.dot(h.astype(cd), w3.astype(cd),
                    preferred_element_type=jnp.float32) + b3
        return h

    bo = mlp(branch_input, params["bw1"], params["bb1"], params["bw2"],
             params["bb2"], params["bw3"], params["bb3"])
    to = mlp(trunk_input, params["tw1"], params["tb1"], params["tw2"],
             params["tb2"], params["tw3"], params["tb3"])
    out = jax.lax.dot_general(bo, to,
                              dimension_numbers=(((1,), (1,)), ((), ())),
                              preferred_element_type=jnp.float32)
    return out + params["bias"][0]


if __name__ == "__main__":
    branch_input_dim = 16
    trunk_input_dim = 8
    hidden_dim = 64
    output_dim = 64
    n_branch = 8       # batch of branch samples
    n_trunk = 16       # number of trunk query points

    key = jax.random.PRNGKey(0)
    k_param, k_bx, k_tx = jax.random.split(key, 3)

    params = init_params(k_param, branch_input_dim, trunk_input_dim,
                         hidden_dim, output_dim)
    branch_input = jax.random.normal(k_bx, (n_branch, branch_input_dim),
                                     jnp.float32)
    trunk_input = jax.random.normal(k_tx, (n_trunk, trunk_input_dim),
                                    jnp.float32)

    prepared = prepare_params(params)       # once, outside the jitted forward

    out = simple_deeponet_forward(branch_input, trunk_input, prepared)
    out = jax.block_until_ready(out)
    assert out.shape == (n_branch, n_trunk)

    # Precision-matched reference (bf16 MLP operands, f32 accumulate + f32
    # final contraction) -> tight tolerance.
    ref_matched = reference_forward(branch_input, trunk_input, params,
                                    compute_dtype=jnp.bfloat16)
    assert jnp.allclose(out, ref_matched, atol=2e-2, rtol=2e-2), (
        float(jnp.max(jnp.abs(out - ref_matched))))

    # Full-f32 reference -> loose tolerance (bf16 weight/activation rounding).
    ref_f32 = reference_forward(branch_input, trunk_input, params,
                                compute_dtype=jnp.float32)
    assert jnp.allclose(out, ref_f32, atol=1.5e-1, rtol=1.5e-1), (
        float(jnp.max(jnp.abs(out - ref_f32))))

    # Optional bf16 output path (halves output writeback traffic).
    out_bf16 = simple_deeponet_forward(branch_input, trunk_input, prepared,
                                       out_dtype=jnp.bfloat16)
    out_bf16 = jax.block_until_ready(out_bf16)
    assert out_bf16.shape == (n_branch, n_trunk)
    assert float(jnp.max(jnp.abs(out_bf16.astype(jnp.float32) - out))) < 5e-2

    print("KERNEL_OK")
</pallas_src>

<mosaic_0001>
module attributes {stable_mosaic.version = 11 : i64} {
  func.func @mlp_kernel(%arg0: i32, %arg1: memref<128x8xf32, #tpu.memory_space<vmem>>, %arg2: memref<8x128xbf16, #tpu.memory_space<vmem>>, %arg3: memref<1x128xf32, #tpu.memory_space<vmem>>, %arg4: memref<128x128xbf16, #tpu.memory_space<vmem>>, %arg5: memref<1x128xf32, #tpu.memory_space<vmem>>, %arg6: memref<128x128xbf16, #tpu.memory_space<vmem>>, %arg7: memref<1x128xf32, #tpu.memory_space<vmem>>, %arg8: memref<128x128xf32, #tpu.memory_space<vmem>>) attributes {dimension_semantics = [#tpu.dimension_semantics<parallel>], iteration_bounds = array<i64: 1>, scalar_prefetch = 0 : i64, scratch_operands = 0 : i64, tpu.core_type = #tpu.core_type<tc>, window_params = [{transform_indices = @transform_0, window_bounds = array<i64: 128, 8>}, {pipeline_mode = #tpu.pipeline_mode<synchronous>, transform_indices = @transform_1, window_bounds = array<i64: 8, 128>}, {pipeline_mode = #tpu.pipeline_mode<synchronous>, transform_indices = @transform_2, window_bounds = array<i64: 1, 128>}, {pipeline_mode = #tpu.pipeline_mode<synchronous>, transform_indices = @transform_3, window_bounds = array<i64: 128, 128>}, {pipeline_mode = #tpu.pipeline_mode<synchronous>, transform_indices = @transform_4, window_bounds = array<i64: 1, 128>}, {pipeline_mode = #tpu.pipeline_mode<synchronous>, transform_indices = @transform_5, window_bounds = array<i64: 128, 128>}, {pipeline_mode = #tpu.pipeline_mode<synchronous>, transform_indices = @transform_6, window_bounds = array<i64: 1, 128>}, {transform_indices = @transform_7, window_bounds = array<i64: 128, 128>}]} {
    %c0 = arith.constant 0 : index
    %c0_0 = arith.constant 0 : index
    %0 = vector.load %arg1[%c0, %c0_0] : memref<128x8xf32, #tpu.memory_space<vmem>>, vector<128x8xf32>
    %1 = arith.truncf %0 : vector<128x8xf32> to vector<128x8xbf16>
    %c0_1 = arith.constant 0 : index
    %c0_2 = arith.constant 0 : index
    %2 = vector.load %arg2[%c0_1, %c0_2] : memref<8x128xbf16, #tpu.memory_space<vmem>>, vector<8x128xbf16>
    %cst = arith.constant dense<0.000000e+00> : vector<128x128xf32>
    %3 = tpu.matmul %1, %2, %cst {dimension_numbers = #tpu.dot_dimension_numbers<[1], [0], [0], [1], [0, 0, 1, 1], [], []>} : vector<128x8xbf16>, vector<8x128xbf16>, vector<128x128xf32> -> vector<128x128xf32>
    %c0_3 = arith.constant 0 : index
    %c0_4 = arith.constant 0 : index
    %4 = vector.load %arg3[%c0_3, %c0_4] : memref<1x128xf32, #tpu.memory_space<vmem>>, vector<1x128xf32>
    %5 = vector.broadcast %4 : vector<1x128xf32> to vector<128x128xf32>
    %6 = arith.addf %3, %5 : vector<128x128xf32>
    %cst_5 = arith.constant 0.000000e+00 : f32
    %7 = vector.broadcast %cst_5 : f32 to vector<128x128xf32>
    %8 = arith.maximumf %6, %7 : vector<128x128xf32>
    %9 = arith.truncf %8 : vector<128x128xf32> to vector<128x128xbf16>
    %c0_6 = arith.constant 0 : index
    %c0_7 = arith.constant 0 : index
    %10 = vector.load %arg4[%c0_6, %c0_7] : memref<128x128xbf16, #tpu.memory_space<vmem>>, vector<128x128xbf16>
    %cst_8 = arith.constant dense<0.000000e+00> : vector<128x128xf32>
    %11 = tpu.matmul %9, %10, %cst_8 {dimension_numbers = #tpu.dot_dimension_numbers<[1], [0], [0], [1], [0, 0, 1, 1], [], []>} : vector<128x128xbf16>, vector<128x128xbf16>, vector<128x128xf32> -> vector<128x128xf32>
    %c0_9 = arith.constant 0 : index
    %c0_10 = arith.constant 0 : index
    %12 = vector.load %arg5[%c0_9, %c0_10] : memref<1x128xf32, #tpu.memory_space<vmem>>, vector<1x128xf32>
    %13 = vector.broadcast %12 : vector<1x128xf32> to vector<128x128xf32>
    %14 = arith.addf %11, %13 : vector<128x128xf32>
    %cst_11 = arith.constant 0.000000e+00 : f32
    %15 = vector.broadcast %cst_11 : f32 to vector<128x128xf32>
    %16 = arith.maximumf %14, %15 : vector<128x128xf32>
    %17 = arith.truncf %16 : vector<128x128xf32> to vector<128x128xbf16>
    %c0_12 = arith.constant 0 : index
    %c0_13 = arith.constant 0 : index
    %18 = vector.load %arg6[%c0_12, %c0_13] : memref<128x128xbf16, #tpu.memory_space<vmem>>, vector<128x128xbf16>
    %cst_14 = arith.constant dense<0.000000e+00> : vector<128x128xf32>
    %19 = tpu.matmul %17, %18, %cst_14 {dimension_numbers = #tpu.dot_dimension_numbers<[1], [0], [0], [1], [0, 0, 1, 1], [], []>} : vector<128x128xbf16>, vector<128x128xbf16>, vector<128x128xf32> -> vector<128x128xf32>
    %c0_15 = arith.constant 0 : index
    %c0_16 = arith.constant 0 : index
    %20 = vector.load %arg7[%c0_15, %c0_16] : memref<1x128xf32, #tpu.memory_space<vmem>>, vector<1x128xf32>
    %21 = vector.broadcast %20 : vector<1x128xf32> to vector<128x128xf32>
    %22 = arith.addf %19, %21 : vector<128x128xf32>
    %c0_17 = arith.constant 0 : index
    %c0_18 = arith.constant 0 : index
    %23 = vector.load %arg8[%c0_17, %c0_18] : memref<128x128xf32, #tpu.memory_space<vmem>>, vector<128x128xf32>
    tpu.vector_store %arg8[%c0_17, %c0_18], %22 {strides = array<i32>} : memref<128x128xf32, #tpu.memory_space<vmem>>, vector<128x128xf32>,
    return
  }
  func.func @transform_0(%arg0: i32) -> (i32, i32) {
    %c0_i32 = arith.constant 0 : i32
    %c0_i32_0 = arith.constant 0 : i32
    return %arg0, %c0_i32 : i32, i32
  }
  func.func @transform_1(%arg0: i32) -> (i32, i32) {
    %c0_i32 = arith.constant 0 : i32
    %c0_i32_0 = arith.constant 0 : i32
    %c0_i32_1 = arith.constant 0 : i32
    return %c0_i32, %c0_i32_0 : i32, i32
  }
  func.func @transform_2(%arg0: i32) -> (i32, i32) {
    %c0_i32 = arith.constant 0 : i32
    %c0_i32_0 = arith.constant 0 : i32
    %c0_i32_1 = arith.constant 0 : i32
    return %c0_i32, %c0_i32_0 : i32, i32
  }
  func.func @transform_3(%arg0: i32) -> (i32, i32) {
    %c0_i32 = arith.constant 0 : i32
    %c0_i32_0 = arith.constant 0 : i32
    %c0_i32_1 = arith.constant 0 : i32
    return %c0_i32, %c0_i32_0 : i32, i32
  }
  func.func @transform_4(%arg0: i32) -> (i32, i32) {
    %c0_i32 = arith.constant 0 : i32
    %c0_i32_0 = arith.constant 0 : i32
    %c0_i32_1 = arith.constant 0 : i32
    return %c0_i32, %c0_i32_0 : i32, i32
  }
  func.func @transform_5(%arg0: i32) -> (i32, i32) {
    %c0_i32 = arith.constant 0 : i32
    %c0_i32_0 = arith.constant 0 : i32
    %c0_i32_1 = arith.constant 0 : i32
    return %c0_i32, %c0_i32_0 : i32, i32
  }
  func.func @transform_6(%arg0: i32) -> (i32, i32) {
    %c0_i32 = arith.constant 0 : i32
    %c0_i32_0 = arith.constant 0 : i32
    %c0_i32_1 = arith.constant 0 : i32
    return %c0_i32, %c0_i32_0 : i32, i32
  }
  func.func @transform_7(%arg0: i32) -> (i32, i32) {
    %c0_i32 = arith.constant 0 : i32
    %c0_i32_0 = arith.constant 0 : i32
    return %arg0, %c0_i32 : i32, i32
  }
}

module attributes {stable_mosaic.version = 11 : i64} {
  func.func @outer_product_kernel(%arg0: i32, %arg1: i32, %arg2: memref<1xf32, #tpu.memory_space<smem>>, %arg3: memref<8x128xf32, #tpu.memory_space<vmem>>, %arg4: memref<128x128xf32, #tpu.memory_space<vmem>>, %arg5: memref<8x128xf32, #tpu.memory_space<vmem>>) attributes {dimension_semantics = [#tpu.dimension_semantics<parallel>, #tpu.dimension_semantics<parallel>], iteration_bounds = array<i64: 1, 1>, scalar_prefetch = 0 : i64, scratch_operands = 0 : i64, tpu.core_type = #tpu.core_type<tc>, window_params = [{transform_indices = @transform_0, window_bounds = array<i64: 1>}, {transform_indices = @transform_1, window_bounds = array<i64: 8, 128>}, {transform_indices = @transform_2, window_bounds = array<i64: 128, 128>}, {transform_indices = @transform_3, window_bounds = array<i64: 8, 128>}]} {
    %c0 = arith.constant 0 : index
    %c0_0 = arith.constant 0 : index
    %0 = vector.load %arg3[%c0, %c0_0] : memref<8x128xf32, #tpu.memory_space<vmem>>, vector<8x128xf32>
    %c0_1 = arith.constant 0 : index
    %c0_2 = arith.constant 0 : index
    %1 = vector.load %arg4[%c0_1, %c0_2] : memref<128x128xf32, #tpu.memory_space<vmem>>, vector<128x128xf32>
    %cst = arith.constant dense<0.000000e+00> : vector<8x128xf32>
    %2 = tpu.matmul %0, %1, %cst {dimension_numbers = #tpu.dot_dimension_numbers<[1], [0], [0], [1], [0, 0, 1, 1], [], []>} : vector<8x128xf32>, vector<128x128xf32>, vector<8x128xf32> -> vector<8x128xf32>
    %c0_3 = arith.constant 0 : index
    %3 = memref.load %arg2[%c0_3] : memref<1xf32, #tpu.memory_space<smem>>
    %4 = vector.broadcast %3 : f32 to vector<8x128xf32>
    %5 = arith.addf %2, %4 : vector<8x128xf32>
    %c0_4 = arith.constant 0 : index
    %c0_5 = arith.constant 0 : index
    %6 = vector.load %arg5[%c0_4, %c0_5] : memref<8x128xf32, #tpu.memory_space<vmem>>, vector<8x128xf32>
    tpu.vector_store %arg5[%c0_4, %c0_5], %5 {strides = array<i32>} : memref<8x128xf32, #tpu.memory_space<vmem>>, vector<8x128xf32>,
    return
  }
  func.func @transform_0(%arg0: i32, %arg1: i32) -> i32 {
    %c0_i32 = arith.constant 0 : i32
    %c0_i32_0 = arith.constant 0 : i32
    return %c0_i32 : i32
  }
  func.func @transform_1(%arg0: i32, %arg1: i32) -> (i32, i32) {
    %c0_i32 = arith.constant 0 : i32
    %c0_i32_0 = arith.constant 0 : i32
    return %arg0, %c0_i32 : i32, i32
  }
  func.func @transform_2(%arg0: i32, %arg1: i32) -> (i32, i32) {
    %c0_i32 = arith.constant 0 : i32
    %c0_i32_0 = arith.constant 0 : i32
    return %c0_i32, %arg1 : i32, i32
  }
  func.func @transform_3(%arg0: i32, %arg1: i32) -> (i32, i32) {
    %c0_i32 = arith.constant 0 : i32
    return %arg0, %arg1 : i32, i32
  }
}

module attributes {stable_mosaic.version = 11 : i64} {
  func.func @mlp_kernel(%arg0: i32, %arg1: memref<8x16xf32, #tpu.memory_space<vmem>>, %arg2: memref<16x128xbf16, #tpu.memory_space<vmem>>, %arg3: memref<1x128xf32, #tpu.memory_space<vmem>>, %arg4: memref<128x128xbf16, #tpu.memory_space<vmem>>, %arg5: memref<1x128xf32, #tpu.memory_space<vmem>>, %arg6: memref<128x128xbf16, #tpu.memory_space<vmem>>, %arg7: memref<1x128xf32, #tpu.memory_space<vmem>>, %arg8: memref<8x128xf32, #tpu.memory_space<vmem>>) attributes {dimension_semantics = [#tpu.dimension_semantics<parallel>], iteration_bounds = array<i64: 1>, scalar_prefetch = 0 : i64, scratch_operands = 0 : i64, tpu.core_type = #tpu.core_type<tc>, window_params = [{transform_indices = @transform_0, window_bounds = array<i64: 8, 16>}, {pipeline_mode = #tpu.pipeline_mode<synchronous>, transform_indices = @transform_1, window_bounds = array<i64: 16, 128>}, {pipeline_mode = #tpu.pipeline_mode<synchronous>, transform_indices = @transform_2, window_bounds = array<i64: 1, 128>}, {pipeline_mode = #tpu.pipeline_mode<synchronous>, transform_indices = @transform_3, window_bounds = array<i64: 128, 128>}, {pipeline_mode = #tpu.pipeline_mode<synchronous>, transform_indices = @transform_4, window_bounds = array<i64: 1, 128>}, {pipeline_mode = #tpu.pipeline_mode<synchronous>, transform_indices = @transform_5, window_bounds = array<i64: 128, 128>}, {pipeline_mode = #tpu.pipeline_mode<synchronous>, transform_indices = @transform_6, window_bounds = array<i64: 1, 128>}, {transform_indices = @transform_7, window_bounds = array<i64: 8, 128>}]} {
    %c0 = arith.constant 0 : index
    %c0_0 = arith.constant 0 : index
    %0 = vector.load %arg1[%c0, %c0_0] : memref<8x16xf32, #tpu.memory_space<vmem>>, vector<8x16xf32>
    %1 = arith.truncf %0 : vector<8x16xf32> to vector<8x16xbf16>
    %c0_1 = arith.constant 0 : index
    %c0_2 = arith.constant 0 : index
    %2 = vector.load %arg2[%c0_1, %c0_2] : memref<16x128xbf16, #tpu.memory_space<vmem>>, vector<16x128xbf16>
    %cst = arith.constant dense<0.000000e+00> : vector<8x128xf32>
    %3 = tpu.matmul %1, %2, %cst {dimension_numbers = #tpu.dot_dimension_numbers<[1], [0], [0], [1], [0, 0, 1, 1], [], []>} : vector<8x16xbf16>, vector<16x128xbf16>, vector<8x128xf32> -> vector<8x128xf32>
    %c0_3 = arith.constant 0 : index
    %c0_4 = arith.constant 0 : index
    %4 = vector.load %arg3[%c0_3, %c0_4] : memref<1x128xf32, #tpu.memory_space<vmem>>, vector<1x128xf32>
    %5 = vector.broadcast %4 : vector<1x128xf32> to vector<8x128xf32>
    %6 = arith.addf %3, %5 : vector<8x128xf32>
    %cst_5 = arith.constant 0.000000e+00 : f32
    %7 = vector.broadcast %cst_5 : f32 to vector<8x128xf32>
    %8 = arith.maximumf %6, %7 : vector<8x128xf32>
    %9 = arith.truncf %8 : vector<8x128xf32> to vector<8x128xbf16>
    %c0_6 = arith.constant 0 : index
    %c0_7 = arith.constant 0 : index
    %10 = vector.load %arg4[%c0_6, %c0_7] : memref<128x128xbf16, #tpu.memory_space<vmem>>, vector<128x128xbf16>
    %cst_8 = arith.constant dense<0.000000e+00> : vector<8x128xf32>
    %11 = tpu.matmul %9, %10, %cst_8 {dimension_numbers = #tpu.dot_dimension_numbers<[1], [0], [0], [1], [0, 0, 1, 1], [], []>} : vector<8x128xbf16>, vector<128x128xbf16>, vector<8x128xf32> -> vector<8x128xf32>
    %c0_9 = arith.constant 0 : index
    %c0_10 = arith.constant 0 : index
    %12 = vector.load %arg5[%c0_9, %c0_10] : memref<1x128xf32, #tpu.memory_space<vmem>>, vector<1x128xf32>
    %13 = vector.broadcast %12 : vector<1x128xf32> to vector<8x128xf32>
    %14 = arith.addf %11, %13 : vector<8x128xf32>
    %cst_11 = arith.constant 0.000000e+00 : f32
    %15 = vector.broadcast %cst_11 : f32 to vector<8x128xf32>
    %16 = arith.maximumf %14, %15 : vector<8x128xf32>
    %17 = arith.truncf %16 : vector<8x128xf32> to vector<8x128xbf16>
    %c0_12 = arith.constant 0 : index
    %c0_13 = arith.constant 0 : index
    %18 = vector.load %arg6[%c0_12, %c0_13] : memref<128x128xbf16, #tpu.memory_space<vmem>>, vector<128x128xbf16>
    %cst_14 = arith.constant dense<0.000000e+00> : vector<8x128xf32>
    %19 = tpu.matmul %17, %18, %cst_14 {dimension_numbers = #tpu.dot_dimension_numbers<[1], [0], [0], [1], [0, 0, 1, 1], [], []>} : vector<8x128xbf16>, vector<128x128xbf16>, vector<8x128xf32> -> vector<8x128xf32>
    %c0_15 = arith.constant 0 : index
    %c0_16 = arith.constant 0 : index
    %20 = vector.load %arg7[%c0_15, %c0_16] : memref<1x128xf32, #tpu.memory_space<vmem>>, vector<1x128xf32>
    %21 = vector.broadcast %20 : vector<1x128xf32> to vector<8x128xf32>
    %22 = arith.addf %19, %21 : vector<8x128xf32>
    %c0_17 = arith.constant 0 : index
    %c0_18 = arith.constant 0 : index
    %23 = vector.load %arg8[%c0_17, %c0_18] : memref<8x128xf32, #tpu.memory_space<vmem>>, vector<8x128xf32>
    tpu.vector_store %arg8[%c0_17, %c0_18], %22 {strides = array<i32>} : memref<8x128xf32, #tpu.memory_space<vmem>>, vector<8x128xf32>,
    return
  }
  func.func @transform_0(%arg0: i32) -> (i32, i32) {
    %c0_i32 = arith.constant 0 : i32
    %c0_i32_0 = arith.constant 0 : i32
    return %arg0, %c0_i32 : i32, i32
  }
  func.func @transform_1(%arg0: i32) -> (i32, i32) {
    %c0_i32 = arith.constant 0 : i32
    %c0_i32_0 = arith.constant 0 : i32
    %c0_i32_1 = arith.constant 0 : i32
    return %c0_i32, %c0_i32_0 : i32, i32
  }
  func.func @transform_2(%arg0: i32) -> (i32, i32) {
    %c0_i32 = arith.constant 0 : i32
    %c0_i32_0 = arith.constant 0 : i32
    %c0_i32_1 = arith.constant 0 : i32
    return %c0_i32, %c0_i32_0 : i32, i32
  }
  func.func @transform_3(%arg0: i32) -> (i32, i32) {
    %c0_i32 = arith.constant 0 : i32
    %c0_i32_0 = arith.constant 0 : i32
    %c0_i32_1 = arith.constant 0 : i32
    return %c0_i32, %c0_i32_0 : i32, i32
  }
  func.func @transform_4(%arg0: i32) -> (i32, i32) {
    %c0_i32 = arith.constant 0 : i32
    %c0_i32_0 = arith.constant 0 : i32
    %c0_i32_1 = arith.constant 0 : i32
    return %c0_i32, %c0_i32_0 : i32, i32
  }
  func.func @transform_5(%arg0: i32) -> (i32, i32) {
    %c0_i32 = arith.constant 0 : i32
    %c0_i32_0 = arith.constant 0 : i32
    %c0_i32_1 = arith.constant 0 : i32
    return %c0_i32, %c0_i32_0 : i32, i32
  }
  func.func @transform_6(%arg0: i32) -> (i32, i32) {
    %c0_i32 = arith.constant 0 : i32
    %c0_i32_0 = arith.constant 0 : i32
    %c0_i32_1 = arith.constant 0 : i32
    return %c0_i32, %c0_i32_0 : i32, i32
  }
  func.func @transform_7(%arg0: i32) -> (i32, i32) {
    %c0_i32 = arith.constant 0 : i32
    %c0_i32_0 = arith.constant 0 : i32
    return %arg0, %c0_i32 : i32, i32
  }
}

</mosaic_0001>

<llo_original>
// kernel: _forward_impl.5
$region0: #{_forward_impl.5}
  #allocation0 [shape = 'u32[]', space=smem, size = 0x4, offset = 0x4, fixed_abs, tag = 'smem constant byte address 0x4 - core index']
  #allocation1 [shape = 'u32[144,128]{1,0:T(1,128)}', space=vmem, size = 0x12000, scoped, tag = 'internal scratch']
  #allocation2 [shape = 'f32[1]{0:T(128)S(6)}', space=smem, size = 0x200, scoped, tag = 'scoped memory for _forward_impl.5']
  %s0 = inlined_call_operand.<no memory space> [shape: f32[1], index: 0, kind: input, shape index: {}]
  %s1 = inlined_call_operand.vmem [shape: f32[8,128], index: 1, kind: input, shape index: {}]
  %s2 = inlined_call_operand.vmem [shape: f32[128,128], index: 2, kind: input, shape index: {}]
  %s3 = inlined_call_operand.hbm [shape: f32[8,128], index: 3, kind: output, shape index: {}]
  %s4 = sld [smem:[#allocation0]]
  $region22: #{_forward_impl.5} parent=0
    _
  %s6 = ssub.s32 1, %s4
  %s7 = scalar_select 0, %s6, %s4
  %8 = sst [smem:[#allocation2]] %s0
  $region1: #{_forward_impl.5} parent=0
    #allocation3 [shape = 'u8[4096]{0}', space=vmem, size = 0x1000, scoped, tag = 'output window, operand 0, single buffered']
    #allocation4 [shape = 's32[1]{0}', space=sflag, size = 0x4, scoped, tag = 'scoped memory for _forward_impl.5']
    %9 = vsyncpa [#allocation4], 0
    // Predicated region
    $region2: #{_forward_impl.5} parent=1 // pred_check
      _
    $region3: #{_forward_impl.5} parent=1 // pred_check_branch
      %11 = sbr.rel (0) target = $region5
    $region4: #{_forward_impl.5} parent=1 // pred_region
      _
    $region5: #{_forward_impl.5} parent=1 // pred_fallthru
      _
    // Predicated region
    $region6: #{_forward_impl.5} parent=1 // pred_check
      _
    $region7: #{_forward_impl.5} parent=1 // pred_check_branch
      %13 = sbr.rel (0) target = $region9
    $region8: #{_forward_impl.5} parent=1 // pred_region
      _
    $region9: #{_forward_impl.5} parent=1 // pred_fallthru
      _
    // Predicated region
    $region10: #{_forward_impl.5} parent=1 // pred_check
      _
    $region11: #{_forward_impl.5} parent=1 // pred_check_branch
      %15 = sbr.rel (0) target = $region13
    $region12: #{_forward_impl.5} parent=1 // pred_region
      _
    $region13: #{_forward_impl.5} parent=1 // pred_fallthru
      _
    %v16 = vld [vmem:[%s1] sm:$0xff]
    %v17 = vld [vmem:[%s2] sm:$0xff]
    %v18 = vld [vmem:[%s2 + $0x8] sm:$0xff]
    %v19 = vld [vmem:[%s2 + $0x10] sm:$0xff]
    %v20 = vld [vmem:[%s2 + $0x18] sm:$0xff]
    %v21 = vld [vmem:[%s2 + $0x20] sm:$0xff]
    %v22 = vld [vmem:[%s2 + $0x28] sm:$0xff]
    %v23 = vld [vmem:[%s2 + $0x30] sm:$0xff]
    %v24 = vld [vmem:[%s2 + $0x38] sm:$0xff]
    %v25 = vld [vmem:[%s2 + $0x40] sm:$0xff]
    %v26 = vld [vmem:[%s2 + $0x48] sm:$0xff]
    %v27 = vld [vmem:[%s2 + $0x50] sm:$0xff]
    %v28 = vld [vmem:[%s2 + $0x58] sm:$0xff]
    %v29 = vld [vmem:[%s2 + $0x60] sm:$0xff]
    %v30 = vld [vmem:[%s2 + $0x68] sm:$0xff]
    %v31 = vld [vmem:[%s2 + $0x70] sm:$0xff]
    %v32 = vld [vmem:[%s2 + $0x78] sm:$0xff]
    %s33 = sld [smem:[#allocation2]]
    %v34 = vstv %s33
    %35 = vmatprep.subr.mxu0 0.0
    %36 = vmatpush1.msra.mxu0 %v17
    %37 = vmatprep.subr.mxu0 0.0
    %38 = vmatpush1.msra.mxu0 %v18
    %39 = vmatprep.subr.mxu0 0.0
    %40 = vmatpush1.msra.mxu0 %v19
    %41 = vmatprep.subr.mxu0 0.0
    %42 = vmatpush1.msra.mxu0 %v20
    %43 = vmatprep.subr.mxu0 0.0
    %44 = vmatpush1.msra.mxu0 %v21
    %45 = vmatprep.subr.mxu0 0.0
    %46 = vmatpush1.msra.mxu0 %v22
    %47 = vmatprep.subr.mxu0 0.0
    %48 = vmatpush1.msra.mxu0 %v23
    %49 = vmatprep.subr.mxu0 0.0
    %50 = vmatpush1.msra.mxu0 %v24
    %51 = vmatprep.subr.mxu0 0.0
    %52 = vmatpush1.msra.mxu0 %v25
    %53 = vmatprep.subr.mxu0 0.0
    %54 = vmatpush1.msra.mxu0 %v26
    %55 = vmatprep.subr.mxu0 0.0
    %56 = vmatpush1.msra.mxu0 %v27
    %57 = vmatprep.subr.mxu0 0.0
    %58 = vmatpush1.msra.mxu0 %v28
    %59 = vmatprep.subr.mxu0 0.0
    %60 = vmatpush1.msra.mxu0 %v29
    %61 = vmatprep.subr.mxu0 0.0
    %62 = vmatpush1.msra.mxu0 %v30
    %63 = vmatprep.subr.mxu0 0.0
    %64 = vmatpush1.msra.mxu0 %v31
    %65 = vmatprep.subr.mxu0 0.0
    %66 = vmatpush1.msra.mxu0 %v32
    %67 = vmatprep.subr.mxu0 0.0
    %68 = vmatpush1.msra.mxu0 0.0
    %69 = vmatprep.subr.mxu0 0.0
    %70 = vmatpush1.msra.mxu0 0.0
    %71 = vmatprep.subr.mxu0 0.0
    %72 = vmatpush1.msra.mxu0 0.0
    %73 = vmatprep.subr.mxu0 0.0
    %74 = vmatpush1.msra.mxu0 0.0
    %75 = vmatprep.subr.mxu0 0.0
    %76 = vmatpush1.msra.mxu0 0.0
    %77 = vmatprep.subr.mxu0 0.0
    %78 = vmatpush1.msra.mxu0 0.0
    %79 = vmatprep.subr.mxu0 0.0
    %80 = vmatpush1.msra.mxu0 0.0
    %81 = vmatprep.subr.mxu0 0.0
    %82 = vmatpush1.msra.mxu0 0.0
    %83 = vmatprep.subr.mxu0 0.0
    %84 = vmatpush1.msra.mxu0 0.0
    %85 = vmatprep.subr.mxu0 0.0
    %86 = vmatpush1.msra.mxu0 0.0
    %87 = vmatprep.subr.mxu0 0.0
    %88 = vmatpush1.msra.mxu0 0.0
    %89 = vmatprep.subr.mxu0 0.0
    %90 = vmatpush1.msra.mxu0 0.0
    %91 = vmatprep.subr.mxu0 0.0
    %92 = vmatpush1.msra.mxu0 0.0
    %93 = vmatprep.subr.mxu0 0.0
    %94 = vmatpush1.msra.mxu0 0.0
    %95 = vmatprep.subr.mxu0 0.0
    %96 = vmatpush1.msra.mxu0 0.0
    %97 = vmatprep.subr.mxu0 0.0
    %98 = vmatpush1.msra.mxu0 0.0
    %99 = vmatprep.mubr.f32.mxu0 0.0
    %100 = vmatmul.mubr.f32.gmra.mrb[0].mxu0 %v16
    %v101 = vpop.f32.mrb[0].mxu0
    %v102 = vadd.f32 %v34, %v101
    %v103 = vpop.f32.mrb[0].mxu0
    %104 = vdwg.mxu0
    %105 = vst [vmem:[#allocation3] sm:$0xff] %v102
    // Predicated region
    $region14: #{_forward_impl.5} parent=1 // pred_check
      _
    $region15: #{_forward_impl.5} parent=1 // pred_check_branch
      %107 = sbr.rel (0) target = $region17
    $region16: #{_forward_impl.5} parent=1 // pred_region
      %s109 = ssub.s32 128, 128
      %110 = vsyncadd [#allocation4], %s109
      %s112 = sshll.u32 [#allocation3], 4
      %s113 = int_to_ptr.vmem [resolvable:$true] %s112
      %115 = dma.vmem_to_hbm [thread:$0]  %s113, 128, %s3, [#allocation4]
    $region17: #{_forward_impl.5} parent=1 // pred_fallthru
      _
    // Predicated region
    $region18: #{_forward_impl.5} parent=1 // pred_check
      _
    $region19: #{_forward_impl.5} parent=1 // pred_check_branch
      %117 = sbr.rel (0) target = $region21
    $region20: #{_forward_impl.5} parent=1 // pred_region
      %118 = dma.done [#allocation4], 128
    $region21: #{_forward_impl.5} parent=1 // pred_fallthru
      _
    %119 = vsyncpa [#allocation4], 1

// kernel: _forward_impl.3
$region0: #{_forward_impl.3}
  #allocation0 [shape = 'u32[]', space=smem, size = 0x4, offset = 0x4, fixed_abs, tag = 'smem constant byte address 0x4 - core index']
  #allocation1 [shape = 'u32[144,128]{1,0:T(1,128)}', space=vmem, size = 0x12000, scoped, tag = 'internal scratch']
  %s0 = inlined_call_operand.vmem [shape: f32[8,16], index: 0, kind: input, shape index: {}]
  %s1 = inlined_call_operand.vmem [shape: bf16[16,128], index: 1, kind: input, shape index: {}]
  %s2 = inlined_call_operand.vmem [shape: f32[1,128], index: 2, kind: input, shape index: {}]
  %s3 = inlined_call_operand.vmem [shape: bf16[128,128], index: 3, kind: input, shape index: {}]
  %s4 = inlined_call_operand.vmem [shape: f32[1,128], index: 4, kind: input, shape index: {}]
  %s5 = inlined_call_operand.vmem [shape: bf16[128,128], index: 5, kind: input, shape index: {}]
  %s6 = inlined_call_operand.vmem [shape: f32[1,128], index: 6, kind: input, shape index: {}]
  %s7 = inlined_call_operand.vmem [shape: f32[8,128], index: 7, kind: output, shape index: {}]
  %s8 = sld [smem:[#allocation0]]
  $region38: #{_forward_impl.3} parent=0
    _
  %s10 = ssub.s32 1, %s8
  %s11 = scalar_select 0, %s10, %s8
  // Predicated region
  $region2: #{_forward_impl.3} parent=0 // pred_check
    _
  $region3: #{_forward_impl.3} parent=0 // pred_check_branch
    %13 = sbr.rel (0) target = $region5
  $region4: #{_forward_impl.3} parent=0 // pred_region
    _
  $region5: #{_forward_impl.3} parent=0 // pred_fallthru
    _
  // Predicated region
  $region6: #{_forward_impl.3} parent=0 // pred_check
    _
  $region7: #{_forward_impl.3} parent=0 // pred_check_branch
    %15 = sbr.rel (0) target = $region9
  $region8: #{_forward_impl.3} parent=0 // pred_region
    _
  $region9: #{_forward_impl.3} parent=0 // pred_fallthru
    _
  // Predicated region
  $region10: #{_forward_impl.3} parent=0 // pred_check
    _
  $region11: #{_forward_impl.3} parent=0 // pred_check_branch
    %17 = sbr.rel (0) target = $region13
  $region12: #{_forward_impl.3} parent=0 // pred_region
    _
  $region13: #{_forward_impl.3} parent=0 // pred_fallthru
    _
  // Predicated region
  $region14: #{_forward_impl.3} parent=0 // pred_check
    _
  $region15: #{_forward_impl.3} parent=0 // pred_check_branch
    %19 = sbr.rel (0) target = $region17
  $region16: #{_forward_impl.3} parent=0 // pred_region
    _
  $region17: #{_forward_impl.3} parent=0 // pred_fallthru
    _
  // Predicated region
  $region18: #{_forward_impl.3} parent=0 // pred_check
    _
  $region19: #{_forward_impl.3} parent=0 // pred_check_branch
    %21 = sbr.rel (0) target = $region21
  $region20: #{_forward_impl.3} parent=0 // pred_region
    _
  $region21: #{_forward_impl.3} parent=0 // pred_fallthru
    _
  // Predicated region
  $region22: #{_forward_impl.3} parent=0 // pred_check
    _
  $region23: #{_forward_impl.3} parent=0 // pred_check_branch
    %23 = sbr.rel (0) target = $region25
  $region24: #{_forward_impl.3} parent=0 // pred_region
    _
  $region25: #{_forward_impl.3} parent=0 // pred_fallthru
    _
  // Predicated region
  $region26: #{_forward_impl.3} parent=0 // pred_check
    _
  $region27: #{_forward_impl.3} parent=0 // pred_check_branch
    %25 = sbr.rel (0) target = $region29
  $region28: #{_forward_impl.3} parent=0 // pred_region
    _
  $region29: #{_forward_impl.3} parent=0 // pred_fallthru
    _
  %v27 = vld [vmem:[%s0] sm:$0xff]
  %v28 = vpack.c.bf16 %v27, %v27
  %v29 = vld [vmem:[%s1] sm:$0xf]
  %v30 = vld [vmem:[%s1 + $0x4] sm:$0xf]
  %v31 = vld [vmem:[%s2] sm:$0x1]
  %v33 = vlaneseq
  %v34 = vshrl.u32 %v33, 7
  %v35 = vsub.s32 0, %v34
  %v36 = vrot.slane %v31, %v35
  %v40 = vunpack.c.l.b16 %v29
  %v41 = vunpack.c.l.b16 %v30
  %v42 = vpack.c.b16 %v41, %v40
  %vm44 = vcmask 130048
  %v46 = vsel %vm44, %v28, 0
  %48 = vmatprep.subr.bf16.mxu0 0
  %49 = vmatpush1.bf16.msra.mxu0 %v42
  %50 = vmatprep.subr.bf16.mxu0 0
  %51 = vmatpush1.bf16.msra.mxu0 0
  %52 = vmatprep.subr.bf16.mxu0 0
  %53 = vmatpush1.bf16.msra.mxu0 0
  %54 = vmatprep.subr.bf16.mxu0 0
  %55 = vmatpush1.bf16.msra.mxu0 0
  %56 = vmatprep.subr.bf16.mxu0 0
  %57 = vmatpush1.bf16.msra.mxu0 0
  %58 = vmatprep.subr.bf16.mxu0 0
  %59 = vmatpush1.bf16.msra.mxu0 0
  %60 = vmatprep.subr.bf16.mxu0 0
  %61 = vmatpush1.bf16.msra.mxu0 0
  %62 = vmatprep.subr.bf16.mxu0 0
  %63 = vmatpush1.bf16.msra.mxu0 0
  %64 = vmatprep.subr.bf16.mxu0 0
  %65 = vmatpush1.bf16.msra.mxu0 0
  %66 = vmatprep.subr.bf16.mxu0 0
  %67 = vmatpush1.bf16.msra.mxu0 0
  %68 = vmatprep.subr.bf16.mxu0 0
  %69 = vmatpush1.bf16.msra.mxu0 0
  %70 = vmatprep.subr.bf16.mxu0 0
  %71 = vmatpush1.bf16.msra.mxu0 0
  %72 = vmatprep.subr.bf16.mxu0 0
  %73 = vmatpush1.bf16.msra.mxu0 0
  %74 = vmatprep.subr.bf16.mxu0 0
  %75 = vmatpush1.bf16.msra.mxu0 0
  %76 = vmatprep.subr.bf16.mxu0 0
  %77 = vmatpush1.bf16.msra.mxu0 0
  %78 = vmatprep.subr.bf16.mxu0 0
  %79 = vmatpush1.bf16.msra.mxu0 0
  %80 = vmatprep.mubr.bf16.mxu0 0
  %81 = vmatmul.mubr.bf16.gmra.mrb[0].mxu0 %v46
  %v82 = vpop.f32.mrb[0].mxu0
  %v83 = vadd.f32 %v36, %v82
  %v84 = vpop.f32.mrb[0].mxu0
  %v85 = vpop.f32.mrb[0].mxu0
  %v86 = vpop.f32.mrb[0].mxu0
  %87 = vdwg.mxu0
  %v88 = vmax.f32 %v83, 0.0
  %v89 = vpack.c.bf16 %v88, %v88
  %v90 = vld [vmem:[%s3] sm:$0xf]
  %v91 = vld [vmem:[%s3 + $0x4] sm:$0xf]
  %v92 = vld [vmem:[%s3 + $0x8] sm:$0xf]
  %v93 = vld [vmem:[%s3 + $0xc] sm:$0xf]
  %v94 = vld [vmem:[%s3 + $0x10] sm:$0xf]
  %v95 = vld [vmem:[%s3 + $0x14] sm:$0xf]
  %v96 = vld [vmem:[%s3 + $0x18] sm:$0xf]
  %v97 = vld [vmem:[%s3 + $0x1c] sm:$0xf]
  %v98 = vld [vmem:[%s3 + $0x20] sm:$0xf]
  %v99 = vld [vmem:[%s3 + $0x24] sm:$0xf]
  %v100 = vld [vmem:[%s3 + $0x28] sm:$0xf]
  %v101 = vld [vmem:[%s3 + $0x2c] sm:$0xf]
  %v102 = vld [vmem:[%s3 + $0x30] sm:$0xf]
  %v103 = vld [vmem:[%s3 + $0x34] sm:$0xf]
  %v104 = vld [vmem:[%s3 + $0x38] sm:$0xf]
  %v105 = vld [vmem:[%s3 + $0x3c] sm:$0xf]
  %v106 = vld [vmem:[%s4] sm:$0x1]
  %v108 = vlaneseq
  %v109 = vshrl.u32 %v108, 7
  %v110 = vsub.s32 0, %v109
  %v111 = vrot.slane %v106, %v110
  %v129 = vunpack.c.l.b16 %v90
  %v130 = vunpack.c.l.b16 %v91
  %v131 = vunpack.c.l.b16 %v92
  %v132 = vunpack.c.l.b16 %v93
  %v133 = vunpack.c.l.b16 %v94
  %v134 = vunpack.c.l.b16 %v95
  %v135 = vunpack.c.l.b16 %v96
  %v136 = vunpack.c.l.b16 %v97
  %v137 = vunpack.c.l.b16 %v98
  %v138 = vunpack.c.l.b16 %v99
  %v139 = vunpack.c.l.b16 %v100
  %v140 = vunpack.c.l.b16 %v101
  %v141 = vunpack.c.l.b16 %v102
  %v142 = vunpack.c.l.b16 %v103
  %v143 = vunpack.c.l.b16 %v104
  %v144 = vunpack.c.l.b16 %v105
  %v145 = vpack.c.b16 %v130, %v129
  %v146 = vpack.c.b16 %v132, %v131
  %v147 = vpack.c.b16 %v134, %v133
  %v148 = vpack.c.b16 %v136, %v135
  %v149 = vpack.c.b16 %v138, %v137
  %v150 = vpack.c.b16 %v140, %v139
  %v151 = vpack.c.b16 %v142, %v141
  %v152 = vpack.c.b16 %v144, %v143
  %161 = vmatprep.subr.bf16.mxu0 0
  %162 = vmatpush1.bf16.msra.mxu0 %v145
  %163 = vmatprep.subr.bf16.mxu0 0
  %164 = vmatpush1.bf16.msra.mxu0 %v146
  %165 = vmatprep.subr.bf16.mxu0 0
  %166 = vmatpush1.bf16.msra.mxu0 %v147
  %167 = vmatprep.subr.bf16.mxu0 0
  %168 = vmatpush1.bf16.msra.mxu0 %v148
  %169 = vmatprep.subr.bf16.mxu0 0
  %170 = vmatpush1.bf16.msra.mxu0 %v149
  %171 = vmatprep.subr.bf16.mxu0 0
  %172 = vmatpush1.bf16.msra.mxu0 %v150
  %173 = vmatprep.subr.bf16.mxu0 0
  %174 = vmatpush1.bf16.msra.mxu0 %v151
  %175 = vmatprep.subr.bf16.mxu0 0
  %176 = vmatpush1.bf16.msra.mxu0 %v152
  %177 = vmatprep.subr.bf16.mxu0 0
  %178 = vmatpush1.bf16.msra.mxu0 0
  %179 = vmatprep.subr.bf16.mxu0 0
  %180 = vmatpush1.bf16.msra.mxu0 0
  %181 = vmatprep.subr.bf16.mxu0 0
  %182 = vmatpush1.bf16.msra.mxu0 0
  %183 = vmatprep.subr.bf16.mxu0 0
  %184 = vmatpush1.bf16.msra.mxu0 0
  %185 = vmatprep.subr.bf16.mxu0 0
  %186 = vmatpush1.bf16.msra.mxu0 0
  %187 = vmatprep.subr.bf16.mxu0 0
  %188 = vmatpush1.bf16.msra.mxu0 0
  %189 = vmatprep.subr.bf16.mxu0 0
  %190 = vmatpush1.bf16.msra.mxu0 0
  %191 = vmatprep.subr.bf16.mxu0 0
  %192 = vmatpush1.bf16.msra.mxu0 0
  %193 = vmatprep.mubr.bf16.mxu0 0
  %194 = vmatmul.mubr.bf16.gmra.mrb[0].mxu0 %v89
  %v195 = vpop.f32.mrb[0].mxu0
  %v196 = vadd.f32 %v111, %v195
  %v197 = vpop.f32.mrb[0].mxu0
  %v198 = vpop.f32.mrb[0].mxu0
  %v199 = vpop.f32.mrb[0].mxu0
  %200 = vdwg.mxu0
  %v201 = vmax.f32 %v196, 0.0
  %v202 = vpack.c.bf16 %v201, %v201
  %v203 = vld [vmem:[%s5] sm:$0xf]
  %v204 = vld [vmem:[%s5 + $0x4] sm:$0xf]
  %v205 = vld [vmem:[%s5 + $0x8] sm:$0xf]
  %v206 = vld [vmem:[%s5 + $0xc] sm:$0xf]
  %v207 = vld [vmem:[%s5 + $0x10] sm:$0xf]
  %v208 = vld [vmem:[%s5 + $0x14] sm:$0xf]
  %v209 = vld [vmem:[%s5 + $0x18] sm:$0xf]
  %v210 = vld [vmem:[%s5 + $0x1c] sm:$0xf]
  %v211 = vld [vmem:[%s5 + $0x20] sm:$0xf]
  %v212 = vld [vmem:[%s5 + $0x24] sm:$0xf]
  %v213 = vld [vmem:[%s5 + $0x28] sm:$0xf]
  %v214 = vld [vmem:[%s5 + $0x2c] sm:$0xf]
  %v215 = vld [vmem:[%s5 + $0x30] sm:$0xf]
  %v216 = vld [vmem:[%s5 + $0x34] sm:$0xf]
  %v217 = vld [vmem:[%s5 + $0x38] sm:$0xf]
  %v218 = vld [vmem:[%s5 + $0x3c] sm:$0xf]
  %v219 = vld [vmem:[%s6] sm:$0x1]
  %v221 = vlaneseq
  %v222 = vshrl.u32 %v221, 7
  %v223 = vsub.s32 0, %v222
  %v224 = vrot.slane %v219, %v223
  %v242 = vunpack.c.l.b16 %v203
  %v243 = vunpack.c.l.b16 %v204
  %v244 = vunpack.c.l.b16 %v205
  %v245 = vunpack.c.l.b16 %v206
  %v246 = vunpack.c.l.b16 %v207
  %v247 = vunpack.c.l.b16 %v208
  %v248 = vunpack.c.l.b16 %v209
  %v249 = vunpack.c.l.b16 %v210
  %v250 = vunpack.c.l.b16 %v211
  %v251 = vunpack.c.l.b16 %v212
  %v252 = vunpack.c.l.b16 %v213
  %v253 = vunpack.c.l.b16 %v214
  %v254 = vunpack.c.l.b16 %v215
  %v255 = vunpack.c.l.b16 %v216
  %v256 = vunpack.c.l.b16 %v217
  %v257 = vunpack.c.l.b16 %v218
  %v258 = vpack.c.b16 %v243, %v242
  %v259 = vpack.c.b16 %v245, %v244
  %v260 = vpack.c.b16 %v247, %v246
  %v261 = vpack.c.b16 %v249, %v248
  %v262 = vpack.c.b16 %v251, %v250
  %v263 = vpack.c.b16 %v253, %v252
  %v264 = vpack.c.b16 %v255, %v254
  %v265 = vpack.c.b16 %v257, %v256
  %274 = vmatprep.subr.bf16.mxu0 0
  %275 = vmatpush1.bf16.msra.mxu0 %v258
  %276 = vmatprep.subr.bf16.mxu0 0
  %277 = vmatpush1.bf16.msra.mxu0 %v259
  %278 = vmatprep.subr.bf16.mxu0 0
  %279 = vmatpush1.bf16.msra.mxu0 %v260
  %280 = vmatprep.subr.bf16.mxu0 0
  %281 = vmatpush1.bf16.msra.mxu0 %v261
  %282 = vmatprep.subr.bf16.mxu0 0
  %283 = vmatpush1.bf16.msra.mxu0 %v262
  %284 = vmatprep.subr.bf16.mxu0 0
  %285 = vmatpush1.bf16.msra.mxu0 %v263
  %286 = vmatprep.subr.bf16.mxu0 0
  %287 = vmatpush1.bf16.msra.mxu0 %v264
  %288 = vmatprep.subr.bf16.mxu0 0
  %289 = vmatpush1.bf16.msra.mxu0 %v265
  %290 = vmatprep.subr.bf16.mxu0 0
  %291 = vmatpush1.bf16.msra.mxu0 0
  %292 = vmatprep.subr.bf16.mxu0 0
  %293 = vmatpush1.bf16.msra.mxu0 0
  %294 = vmatprep.subr.bf16.mxu0 0
  %295 = vmatpush1.bf16.msra.mxu0 0
  %296 = vmatprep.subr.bf16.mxu0 0
  %297 = vmatpush1.bf16.msra.mxu0 0
  %298 = vmatprep.subr.bf16.mxu0 0
  %299 = vmatpush1.bf16.msra.mxu0 0
  %300 = vmatprep.subr.bf16.mxu0 0
  %301 = vmatpush1.bf16.msra.mxu0 0
  %302 = vmatprep.subr.bf16.mxu0 0
  %303 = vmatpush1.bf16.msra.mxu0 0
  %304 = vmatprep.subr.bf16.mxu0 0
  %305 = vmatpush1.bf16.msra.mxu0 0
  %306 = vmatprep.mubr.bf16.mxu0 0
  %307 = vmatmul.mubr.bf16.gmra.mrb[0].mxu0 %v202
  %v308 = vpop.f32.mrb[0].mxu0
  %v309 = vadd.f32 %v224, %v308
  %v310 = vpop.f32.mrb[0].mxu0
  %v311 = vpop.f32.mrb[0].mxu0
  %v312 = vpop.f32.mrb[0].mxu0
  %313 = vdwg.mxu0
  %314 = vst [vmem:[%s7] sm:$0xff] %v309
  // Predicated region
  $region30: #{_forward_impl.3} parent=0 // pred_check
    _
  $region31: #{_forward_impl.3} parent=0 // pred_check_branch
    %316 = sbr.rel (0) target = $region33
  $region32: #{_forward_impl.3} parent=0 // pred_region
    _
  $region33: #{_forward_impl.3} parent=0 // pred_fallthru
    _
  // Predicated region
  $region34: #{_forward_impl.3} parent=0 // pred_check
    _
  $region35: #{_forward_impl.3} parent=0 // pred_check_branch
    %318 = sbr.rel (0) target = $region37
  $region36: #{_forward_impl.3} parent=0 // pred_region
    _
  $region37: #{_forward_impl.3} parent=0 // pred_fallthru
    _

// kernel: _forward_impl.4
$region0: #{_forward_impl.4}
  #allocation0 [shape = 'u32[]', space=smem, size = 0x4, offset = 0x4, fixed_abs, tag = 'smem constant byte address 0x4 - core index']
  #allocation1 [shape = 'u32[144,128]{1,0:T(1,128)}', space=vmem, size = 0x12000, scoped, tag = 'internal scratch']
  %s0 = inlined_call_operand.vmem [shape: f32[128,8], index: 0, kind: input, shape index: {}]
  %s1 = inlined_call_operand.vmem [shape: bf16[8,128], index: 1, kind: input, shape index: {}]
  %s2 = inlined_call_operand.vmem [shape: f32[1,128], index: 2, kind: input, shape index: {}]
  %s3 = inlined_call_operand.vmem [shape: bf16[128,128], index: 3, kind: input, shape index: {}]
  %s4 = inlined_call_operand.vmem [shape: f32[1,128], index: 4, kind: input, shape index: {}]
  %s5 = inlined_call_operand.vmem [shape: bf16[128,128], index: 5, kind: input, shape index: {}]
  %s6 = inlined_call_operand.vmem [shape: f32[1,128], index: 6, kind: input, shape index: {}]
  %s7 = inlined_call_operand.vmem [shape: f32[128,128], index: 7, kind: output, shape index: {}]
  %s8 = sld [smem:[#allocation0]]
  $region38: #{_forward_impl.4} parent=0
    _
  %s10 = ssub.s32 1, %s8
  %s11 = scalar_select 0, %s10, %s8
  // Predicated region
  $region2: #{_forward_impl.4} parent=0 // pred_check
    _
  $region3: #{_forward_impl.4} parent=0 // pred_check_branch
    %13 = sbr.rel (0) target = $region5
  $region4: #{_forward_impl.4} parent=0 // pred_region
    _
  $region5: #{_forward_impl.4} parent=0 // pred_fallthru
    _
  // Predicated region
  $region6: #{_forward_impl.4} parent=0 // pred_check
    _
  $region7: #{_forward_impl.4} parent=0 // pred_check_branch
    %15 = sbr.rel (0) target = $region9
  $region8: #{_forward_impl.4} parent=0 // pred_region
    _
  $region9: #{_forward_impl.4} parent=0 // pred_fallthru
    _
  // Predicated region
  $region10: #{_forward_impl.4} parent=0 // pred_check
    _
  $region11: #{_forward_impl.4} parent=0 // pred_check_branch
    %17 = sbr.rel (0) target = $region13
  $region12: #{_forward_impl.4} parent=0 // pred_region
    _
  $region13: #{_forward_impl.4} parent=0 // pred_fallthru
    _
  // Predicated region
  $region14: #{_forward_impl.4} parent=0 // pred_check
    _
  $region15: #{_forward_impl.4} parent=0 // pred_check_branch
    %19 = sbr.rel (0) target = $region17
  $region16: #{_forward_impl.4} parent=0 // pred_region
    _
  $region17: #{_forward_impl.4} parent=0 // pred_fallthru
    _
  // Predicated region
  $region18: #{_forward_impl.4} parent=0 // pred_check
    _
  $region19: #{_forward_impl.4} parent=0 // pred_check_branch
    %21 = sbr.rel (0) target = $region21
  $region20: #{_forward_impl.4} parent=0 // pred_region
    _
  $region21: #{_forward_impl.4} parent=0 // pred_fallthru
    _
  // Predicated region
  $region22: #{_forward_impl.4} parent=0 // pred_check
    _
  $region23: #{_forward_impl.4} parent=0 // pred_check_branch
    %23 = sbr.rel (0) target = $region25
  $region24: #{_forward_impl.4} parent=0 // pred_region
    _
  $region25: #{_forward_impl.4} parent=0 // pred_fallthru
    _
  // Predicated region
  $region26: #{_forward_impl.4} parent=0 // pred_check
    _
  $region27: #{_forward_impl.4} parent=0 // pred_check_branch
    %25 = sbr.rel (0) target = $region29
  $region28: #{_forward_impl.4} parent=0 // pred_region
    _
  $region29: #{_forward_impl.4} parent=0 // pred_fallthru
    _
  %v27 = vld [vmem:[%s0] sm:$0xff]
  %v28 = vld [vmem:[%s0 + $0x8] sm:$0xff]
  %v29 = vld [vmem:[%s0 + $0x10] sm:$0xff]
  %v30 = vld [vmem:[%s0 + $0x18] sm:$0xff]
  %v31 = vld [vmem:[%s0 + $0x20] sm:$0xff]
  %v32 = vld [vmem:[%s0 + $0x28] sm:$0xff]
  %v33 = vld [vmem:[%s0 + $0x30] sm:$0xff]
  %v34 = vld [vmem:[%s0 + $0x38] sm:$0xff]
  %v35 = vld [vmem:[%s0 + $0x40] sm:$0xff]
  %v36 = vld [vmem:[%s0 + $0x48] sm:$0xff]
  %v37 = vld [vmem:[%s0 + $0x50] sm:$0xff]
  %v38 = vld [vmem:[%s0 + $0x58] sm:$0xff]
  %v39 = vld [vmem:[%s0 + $0x60] sm:$0xff]
  %v40 = vld [vmem:[%s0 + $0x68] sm:$0xff]
  %v41 = vld [vmem:[%s0 + $0x70] sm:$0xff]
  %v42 = vld [vmem:[%s0 + $0x78] sm:$0xff]
  %v43 = vpack.c.bf16 %v28, %v27
  %v44 = vpack.c.bf16 %v30, %v29
  %v45 = vpack.c.bf16 %v32, %v31
  %v46 = vpack.c.bf16 %v34, %v33
  %v47 = vpack.c.bf16 %v36, %v35
  %v48 = vpack.c.bf16 %v38, %v37
  %v49 = vpack.c.bf16 %v40, %v39
  %v50 = vpack.c.bf16 %v42, %v41
  %v51 = vld [vmem:[%s1] sm:$0xf]
  %v52 = vld [vmem:[%s2] sm:$0x1]
  %v54 = vlaneseq
  %v55 = vshrl.u32 %v54, 7
  %v56 = vsub.s32 0, %v55
  %v57 = vrot.slane %v52, %v56
  %vm59 = vcmask 64512
  %v61 = vsel %vm59, %v43, 0
  %v64 = vsel %vm59, %v44, 0
  %v67 = vsel %vm59, %v45, 0
  %v70 = vsel %vm59, %v46, 0
  %v73 = vsel %vm59, %v47, 0
  %v76 = vsel %vm59, %v48, 0
  %v79 = vsel %vm59, %v49, 0
  %v82 = vsel %vm59, %v50, 0
  %vm84 = vcmask 1043456
  %v86 = vsel %vm84, %v51, 0
  %88 = vmatprep.subr.bf16.mxu0 0
  %89 = vmatpush1.bf16.msra.mxu0 %v86
  %90 = vmatprep.subr.bf16.mxu0 0
  %91 = vmatpush1.bf16.msra.mxu0 0
  %92 = vmatprep.subr.bf16.mxu0 0
  %93 = vmatpush1.bf16.msra.mxu0 0
  %94 = vmatprep.subr.bf16.mxu0 0
  %95 = vmatpush1.bf16.msra.mxu0 0
  %96 = vmatprep.subr.bf16.mxu0 0
  %97 = vmatpush1.bf16.msra.mxu0 0
  %98 = vmatprep.subr.bf16.mxu0 0
  %99 = vmatpush1.bf16.msra.mxu0 0
  %100 = vmatprep.subr.bf16.mxu0 0
  %101 = vmatpush1.bf16.msra.mxu0 0
  %102 = vmatprep.subr.bf16.mxu0 0
  %103 = vmatpush1.bf16.msra.mxu0 0
  %104 = vmatprep.subr.bf16.mxu0 0
  %105 = vmatpush1.bf16.msra.mxu0 0
  %106 = vmatprep.subr.bf16.mxu0 0
  %107 = vmatpush1.bf16.msra.mxu0 0
  %108 = vmatprep.subr.bf16.mxu0 0
  %109 = vmatpush1.bf16.msra.mxu0 0
  %110 = vmatprep.subr.bf16.mxu0 0
  %111 = vmatpush1.bf16.msra.mxu0 0
  %112 = vmatprep.subr.bf16.mxu0 0
  %113 = vmatpush1.bf16.msra.mxu0 0
  %114 = vmatprep.subr.bf16.mxu0 0
  %115 = vmatpush1.bf16.msra.mxu0 0
  %116 = vmatprep.subr.bf16.mxu0 0
  %117 = vmatpush1.bf16.msra.mxu0 0
  %118 = vmatprep.subr.bf16.mxu0 0
  %119 = vmatpush1.bf16.msra.mxu0 0
  %120 = vmatprep.mubr.bf16.mxu0 0
  %121 = vmatmul.mubr.bf16.gmra.mrb[0].mxu0 %v61
  %v122 = vpop.f32.mrb[0].mxu0
  %v123 = vadd.f32 %v57, %v122
  %v124 = vpop.f32.mrb[0].mxu0
  %v125 = vpop.f32.mrb[0].mxu0
  %v126 = vadd.f32 %v57, %v125
  %v127 = vpop.f32.mrb[0].mxu0
  %128 = vmatprep.mubr.bf16.mxu0 0
  %129 = vmatmul.mubr.bf16.gmra.mrb[0].mxu0 %v64
  %v130 = vpop.f32.mrb[0].mxu0
  %v131 = vadd.f32 %v57, %v130
  %v132 = vpop.f32.mrb[0].mxu0
  %v133 = vpop.f32.mrb[0].mxu0
  %v134 = vadd.f32 %v57, %v133
  %v135 = vpop.f32.mrb[0].mxu0
  %136 = vmatprep.mubr.bf16.mxu0 0
  %137 = vmatmul.mubr.bf16.gmra.mrb[0].mxu0 %v67
  %v138 = vpop.f32.mrb[0].mxu0
  %v139 = vadd.f32 %v57, %v138
  %v140 = vpop.f32.mrb[0].mxu0
  %v141 = vpop.f32.mrb[0].mxu0
  %v142 = vadd.f32 %v57, %v141
  %v143 = vpop.f32.mrb[0].mxu0
  %144 = vmatprep.mubr.bf16.mxu0 0
  %145 = vmatmul.mubr.bf16.gmra.mrb[0].mxu0 %v70
  %v146 = vpop.f32.mrb[0].mxu0
  %v147 = vadd.f32 %v57, %v146
  %v148 = vpop.f32.mrb[0].mxu0
  %v149 = vpop.f32.mrb[0].mxu0
  %v150 = vadd.f32 %v57, %v149
  %v151 = vpop.f32.mrb[0].mxu0
  %152 = vmatprep.mubr.bf16.mxu0 0
  %153 = vmatmul.mubr.bf16.gmra.mrb[0].mxu0 %v73
  %v154 = vpop.f32.mrb[0].mxu0
  %v155 = vadd.f32 %v57, %v154
  %v156 = vpop.f32.mrb[0].mxu0
  %v157 = vpop.f32.mrb[0].mxu0
  %v158 = vadd.f32 %v57, %v157
  %v159 = vpop.f32.mrb[0].mxu0
  %160 = vmatprep.mubr.bf16.mxu0 0
  %161 = vmatmul.mubr.bf16.gmra.mrb[0].mxu0 %v76
  %v162 = vpop.f32.mrb[0].mxu0
  %v163 = vadd.f32 %v57, %v162
  %v164 = vpop.f32.mrb[0].mxu0
  %v165 = vpop.f32.mrb[0].mxu0
  %v166 = vadd.f32 %v57, %v165
  %v167 = vpop.f32.mrb[0].mxu0
  %168 = vmatprep.mubr.bf16.mxu0 0
  %169 = vmatmul.mubr.bf16.gmra.mrb[0].mxu0 %v79
  %v170 = vpop.f32.mrb[0].mxu0
  %v171 = vadd.f32 %v57, %v170
  %v172 = vpop.f32.mrb[0].mxu0
  %v173 = vpop.f32.mrb[0].mxu0
  %v174 = vadd.f32 %v57, %v173
  %v175 = vpop.f32.mrb[0].mxu0
  %176 = vmatprep.mubr.bf16.mxu0 0
  %177 = vmatmul.mubr.bf16.gmra.mrb[0].mxu0 %v82
  %v178 = vpop.f32.mrb[0].mxu0
  %v179 = vadd.f32 %v57, %v178
  %v180 = vpop.f32.mrb[0].mxu0
  %v181 = vpop.f32.mrb[0].mxu0
  %v182 = vadd.f32 %v57, %v181
  %v183 = vpop.f32.mrb[0].mxu0
  %184 = vdwg.mxu0
  %v185 = vmax.f32 %v123, 0.0
  %v186 = vmax.f32 %v126, 0.0
  %v187 = vmax.f32 %v131, 0.0
  %v188 = vmax.f32 %v134, 0.0
  %v189 = vmax.f32 %v139, 0.0
  %v190 = vmax.f32 %v142, 0.0
  %v191 = vmax.f32 %v147, 0.0
  %v192 = vmax.f32 %v150, 0.0
  %v193 = vmax.f32 %v155, 0.0
  %v194 = vmax.f32 %v158, 0.0
  %v195 = vmax.f32 %v163, 0.0
  %v196 = vmax.f32 %v166, 0.0
  %v197 = vmax.f32 %v171, 0.0
  %v198 = vmax.f32 %v174, 0.0
  %v199 = vmax.f32 %v179, 0.0
  %v200 = vmax.f32 %v182, 0.0
  %v201 = vpack.c.bf16 %v186, %v185
  %v202 = vpack.c.bf16 %v188, %v187
  %v203 = vpack.c.bf16 %v190, %v189
  %v204 = vpack.c.bf16 %v192, %v191
  %v205 = vpack.c.bf16 %v194, %v193
  %v206 = vpack.c.bf16 %v196, %v195
  %v207 = vpack.c.bf16 %v198, %v197
  %v208 = vpack.c.bf16 %v200, %v199
  %v209 = vld [vmem:[%s3] sm:$0xf]
  %v210 = vld [vmem:[%s3 + $0x4] sm:$0xf]
  %v211 = vld [vmem:[%s3 + $0x8] sm:$0xf]
  %v212 = vld [vmem:[%s3 + $0xc] sm:$0xf]
  %v213 = vld [vmem:[%s3 + $0x10] sm:$0xf]
  %v214 = vld [vmem:[%s3 + $0x14] sm:$0xf]
  %v215 = vld [vmem:[%s3 + $0x18] sm:$0xf]
  %v216 = vld [vmem:[%s3 + $0x1c] sm:$0xf]
  %v217 = vld [vmem:[%s3 + $0x20] sm:$0xf]
  %v218 = vld [vmem:[%s3 + $0x24] sm:$0xf]
  %v219 = vld [vmem:[%s3 + $0x28] sm:$0xf]
  %v220 = vld [vmem:[%s3 + $0x2c] sm:$0xf]
  %v221 = vld [vmem:[%s3 + $0x30] sm:$0xf]
  %v222 = vld [vmem:[%s3 + $0x34] sm:$0xf]
  %v223 = vld [vmem:[%s3 + $0x38] sm:$0xf]
  %v224 = vld [vmem:[%s3 + $0x3c] sm:$0xf]
  %v225 = vld [vmem:[%s4] sm:$0x1]
  %v227 = vlaneseq
  %v228 = vshrl.u32 %v227, 7
  %v229 = vsub.s32 0, %v228
  %v230 = vrot.slane %v225, %v229
  %v248 = vunpack.c.l.b16 %v209
  %v249 = vunpack.c.l.b16 %v210
  %v250 = vunpack.c.l.b16 %v211
  %v251 = vunpack.c.l.b16 %v212
  %v252 = vunpack.c.l.b16 %v213
  %v253 = vunpack.c.l.b16 %v214
  %v254 = vunpack.c.l.b16 %v215
  %v255 = vunpack.c.l.b16 %v216
  %v256 = vunpack.c.l.b16 %v217
  %v257 = vunpack.c.l.b16 %v218
  %v258 = vunpack.c.l.b16 %v219
  %v259 = vunpack.c.l.b16 %v220
  %v260 = vunpack.c.l.b16 %v221
  %v261 = vunpack.c.l.b16 %v222
  %v262 = vunpack.c.l.b16 %v223
  %v263 = vunpack.c.l.b16 %v224
  %v264 = vpack.c.b16 %v249, %v248
  %v265 = vpack.c.b16 %v251, %v250
  %v266 = vpack.c.b16 %v253, %v252
  %v267 = vpack.c.b16 %v255, %v254
  %v268 = vpack.c.b16 %v257, %v256
  %v269 = vpack.c.b16 %v259, %v258
  %v270 = vpack.c.b16 %v261, %v260
  %v271 = vpack.c.b16 %v263, %v262
  %280 = vmatprep.subr.bf16.mxu0 0
  %281 = vmatpush1.bf16.msra.mxu0 %v264
  %282 = vmatprep.subr.bf16.mxu0 0
  %283 = vmatpush1.bf16.msra.mxu0 %v265
  %284 = vmatprep.subr.bf16.mxu0 0
  %285 = vmatpush1.bf16.msra.mxu0 %v266
  %286 = vmatprep.subr.bf16.mxu0 0
  %287 = vmatpush1.bf16.msra.mxu0 %v267
  %288 = vmatprep.subr.bf16.mxu0 0
  %289 = vmatpush1.bf16.msra.mxu0 %v268
  %290 = vmatprep.subr.bf16.mxu0 0
  %291 = vmatpush1.bf16.msra.mxu0 %v269
  %292 = vmatprep.subr.bf16.mxu0 0
  %293 = vmatpush1.bf16.msra.mxu0 %v270
  %294 = vmatprep.subr.bf16.mxu0 0
  %295 = vmatpush1.bf16.msra.mxu0 %v271
  %296 = vmatprep.subr.bf16.mxu0 0
  %297 = vmatpush1.bf16.msra.mxu0 0
  %298 = vmatprep.subr.bf16.mxu0 0
  %299 = vmatpush1.bf16.msra.mxu0 0
  %300 = vmatprep.subr.bf16.mxu0 0
  %301 = vmatpush1.bf16.msra.mxu0 0
  %302 = vmatprep.subr.bf16.mxu0 0
  %303 = vmatpush1.bf16.msra.mxu0 0
  %304 = vmatprep.subr.bf16.mxu0 0
  %305 = vmatpush1.bf16.msra.mxu0 0
  %306 = vmatprep.subr.bf16.mxu0 0
  %307 = vmatpush1.bf16.msra.mxu0 0
  %308 = vmatprep.subr.bf16.mxu0 0
  %309 = vmatpush1.bf16.msra.mxu0 0
  %310 = vmatprep.subr.bf16.mxu0 0
  %311 = vmatpush1.bf16.msra.mxu0 0
  %312 = vmatprep.mubr.bf16.mxu0 0
  %313 = vmatmul.mubr.bf16.gmra.mrb[0].mxu0 %v201
  %v314 = vpop.f32.mrb[0].mxu0
  %v315 = vadd.f32 %v230, %v314
  %v316 = vpop.f32.mrb[0].mxu0
  %v317 = vpop.f32.mrb[0].mxu0
  %v318 = vadd.f32 %v230, %v317
  %v319 = vpop.f32.mrb[0].mxu0
  %320 = vmatprep.mubr.bf16.mxu0 0
  %321 = vmatmul.mubr.bf16.gmra.mrb[0].mxu0 %v202
  %v322 = vpop.f32.mrb[0].mxu0
  %v323 = vadd.f32 %v230, %v322
  %v324 = vpop.f32.mrb[0].mxu0
  %v325 = vpop.f32.mrb[0].mxu0
  %v326 = vadd.f32 %v230, %v325
  %v327 = vpop.f32.mrb[0].mxu0
  %328 = vmatprep.mubr.bf16.mxu0 0
  %329 = vmatmul.mubr.bf16.gmra.mrb[0].mxu0 %v203
  %v330 = vpop.f32.mrb[0].mxu0
  %v331 = vadd.f32 %v230, %v330
  %v332 = vpop.f32.mrb[0].mxu0
  %v333 = vpop.f32.mrb[0].mxu0
  %v334 = vadd.f32 %v230, %v333
  %v335 = vpop.f32.mrb[0].mxu0
  %336 = vmatprep.mubr.bf16.mxu0 0
  %337 = vmatmul.mubr.bf16.gmra.mrb[0].mxu0 %v204
  %v338 = vpop.f32.mrb[0].mxu0
  %v339 = vadd.f32 %v230, %v338
  %v340 = vpop.f32.mrb[0].mxu0
  %v341 = vpop.f32.mrb[0].mxu0
  %v342 = vadd.f32 %v230, %v341
  %v343 = vpop.f32.mrb[0].mxu0
  %344 = vmatprep.mubr.bf16.mxu0 0
  %345 = vmatmul.mubr.bf16.gmra.mrb[0].mxu0 %v205
  %v346 = vpop.f32.mrb[0].mxu0
  %v347 = vadd.f32 %v230, %v346
  %v348 = vpop.f32.mrb[0].mxu0
  %v349 = vpop.f32.mrb[0].mxu0
  %v350 = vadd.f32 %v230, %v349
  %v351 = vpop.f32.mrb[0].mxu0
  %352 = vmatprep.mubr.bf16.mxu0 0
  %353 = vmatmul.mubr.bf16.gmra.mrb[0].mxu0 %v206
  %v354 = vpop.f32.mrb[0].mxu0
  %v355 = vadd.f32 %v230, %v354
  %v356 = vpop.f32.mrb[0].mxu0
  %v357 = vpop.f32.mrb[0].mxu0
  %v358 = vadd.f32 %v230, %v357
  %v359 = vpop.f32.mrb[0].mxu0
  %360 = vmatprep.mubr.bf16.mxu0 0
  %361 = vmatmul.mubr.bf16.gmra.mrb[0].mxu0 %v207
  %v362 = vpop.f32.mrb[0].mxu0
  %v363 = vadd.f32 %v230, %v362
  %v364 = vpop.f32.mrb[0].mxu0
  %v365 = vpop.f32.mrb[0].mxu0
  %v366 = vadd.f32 %v230, %v365
  %v367 = vpop.f32.mrb[0].mxu0
  %368 = vmatprep.mubr.bf16.mxu0 0
  %369 = vmatmul.mubr.bf16.gmra.mrb[0].mxu0 %v208
  %v370 = vpop.f32.mrb[0].mxu0
  %v371 = vadd.f32 %v230, %v370
  %v372 = vpop.f32.mrb[0].mxu0
  %v373 = vpop.f32.mrb[0].mxu0
  %v374 = vadd.f32 %v230, %v373
  %v375 = vpop.f32.mrb[0].mxu0
  %376 = vdwg.mxu0
  %v377 = vmax.f32 %v315, 0.0
  %v378 = vmax.f32 %v318, 0.0
  %v379 = vmax.f32 %v323, 0.0
  %v380 = vmax.f32 %v326, 0.0
  %v381 = vmax.f32 %v331, 0.0
  %v382 = vmax.f32 %v334, 0.0
  %v383 = vmax.f32 %v339, 0.0
  %v384 = vmax.f32 %v342, 0.0
  %v385 = vmax.f32 %v347, 0.0
  %v386 = vmax.f32 %v350, 0.0
  %v387 = vmax.f32 %v355, 0.0
  %v388 = vmax.f32 %v358, 0.0
  %v389 = vmax.f32 %v363, 0.0
  %v390 = vmax.f32 %v366, 0.0
  %v391 = vmax.f32 %v371, 0.0
  %v392 = vmax.f32 %v374, 0.0
  %v393 = vpack.c.bf16 %v378, %v377
  %v394 = vpack.c.bf16 %v380, %v379
  %v395 = vpack.c.bf16 %v382, %v381
  %v396 = vpack.c.bf16 %v384, %v383
  %v397 = vpack.c.bf16 %v386, %v385
  %v398 = vpack.c.bf16 %v388, %v387
  %v399 = vpack.c.bf16 %v390, %v389
  %v400 = vpack.c.bf16 %v392, %v391
  %v401 = vld [vmem:[%s5] sm:$0xf]
  %v402 = vld [vmem:[%s5 + $0x4] sm:$0xf]
  %v403 = vld [vmem:[%s5 + $0x8] sm:$0xf]
  %v404 = vld [vmem:[%s5 + $0xc] sm:$0xf]
  %v405 = vld [vmem:[%s5 + $0x10] sm:$0xf]
  %v406 = vld [vmem:[%s5 + $0x14] sm:$0xf]
  %v407 = vld [vmem:[%s5 + $0x18] sm:$0xf]
  %v408 = vld [vmem:[%s5 + $0x1c] sm:$0xf]
  %v409 = vld [vmem:[%s5 + $0x20] sm:$0xf]
  %v410 = vld [vmem:[%s5 + $0x24] sm:$0xf]
  %v411 = vld [vmem:[%s5 + $0x28] sm:$0xf]
  %v412 = vld [vmem:[%s5 + $0x2c] sm:$0xf]
  %v413 = vld [vmem:[%s5 + $0x30] sm:$0xf]
  %v414 = vld [vmem:[%s5 + $0x34] sm:$0xf]
  %v415 = vld [vmem:[%s5 + $0x38] sm:$0xf]
  %v416 = vld [vmem:[%s5 + $0x3c] sm:$0xf]
  %v417 = vld [vmem:[%s6] sm:$0x1]
  %v419 = vlaneseq
  %v420 = vshrl.u32 %v419, 7
  %v421 = vsub.s32 0, %v420
  %v422 = vrot.slane %v417, %v421
  %v440 = vunpack.c.l.b16 %v401
  %v441 = vunpack.c.l.b16 %v402
  %v442 = vunpack.c.l.b16 %v403
  %v443 = vunpack.c.l.b16 %v404
  %v444 = vunpack.c.l.b16 %v405
  %v445 = vunpack.c.l.b16 %v406
  %v446 = vunpack.c.l.b16 %v407
  %v447 = vunpack.c.l.b16 %v408
  %v448 = vunpack.c.l.b16 %v409
  %v449 = vunpack.c.l.b16 %v410
  %v450 = vunpack.c.l.b16 %v411
  %v451 = vunpack.c.l.b16 %v412
  %v452 = vunpack.c.l.b16 %v413
  %v453 = vunpack.c.l.b16 %v414
  %v454 = vunpack.c.l.b16 %v415
  %v455 = vunpack.c.l.b16 %v416
  %v456 = vpack.c.b16 %v441, %v440
  %v457 = vpack.c.b16 %v443, %v442
  %v458 = vpack.c.b16 %v445, %v444
  %v459 = vpack.c.b16 %v447, %v446
  %v460 = vpack.c.b16 %v449, %v448
  %v461 = vpack.c.b16 %v451, %v450
  %v462 = vpack.c.b16 %v453, %v452
  %v463 = vpack.c.b16 %v455, %v454
  %472 = vmatprep.subr.bf16.mxu0 0
  %473 = vmatpush1.bf16.msra.mxu0 %v456
  %474 = vmatprep.subr.bf16.mxu0 0
  %475 = vmatpush1.bf16.msra.mxu0 %v457
  %476 = vmatprep.subr.bf16.mxu0 0
  %477 = vmatpush1.bf16.msra.mxu0 %v458
  %478 = vmatprep.subr.bf16.mxu0 0
  %479 = vmatpush1.bf16.msra.mxu0 %v459
  %480 = vmatprep.subr.bf16.mxu0 0
  %481 = vmatpush1.bf16.msra.mxu0 %v460
  %482 = vmatprep.subr.bf16.mxu0 0
  %483 = vmatpush1.bf16.msra.mxu0 %v461
  %484 = vmatprep.subr.bf16.mxu0 0
  %485 = vmatpush1.bf16.msra.mxu0 %v462
  %486 = vmatprep.subr.bf16.mxu0 0
  %487 = vmatpush1.bf16.msra.mxu0 %v463
  %488 = vmatprep.subr.bf16.mxu0 0
  %489 = vmatpush1.bf16.msra.mxu0 0
  %490 = vmatprep.subr.bf16.mxu0 0
  %491 = vmatpush1.bf16.msra.mxu0 0
  %492 = vmatprep.subr.bf16.mxu0 0
  %493 = vmatpush1.bf16.msra.mxu0 0
  %494 = vmatprep.subr.bf16.mxu0 0
  %495 = vmatpush1.bf16.msra.mxu0 0
  %496 = vmatprep.subr.bf16.mxu0 0
  %497 = vmatpush1.bf16.msra.mxu0 0
  %498 = vmatprep.subr.bf16.mxu0 0
  %499 = vmatpush1.bf16.msra.mxu0 0
  %500 = vmatprep.subr.bf16.mxu0 0
  %501 = vmatpush1.bf16.msra.mxu0 0
  %502 = vmatprep.subr.bf16.mxu0 0
  %503 = vmatpush1.bf16.msra.mxu0 0
  %504 = vmatprep.mubr.bf16.mxu0 0
  %505 = vmatmul.mubr.bf16.gmra.mrb[0].mxu0 %v393
  %v506 = vpop.f32.mrb[0].mxu0
  %v507 = vadd.f32 %v422, %v506
  %v508 = vpop.f32.mrb[0].mxu0
  %v509 = vpop.f32.mrb[0].mxu0
  %v510 = vadd.f32 %v422, %v509
  %v511 = vpop.f32.mrb[0].mxu0
  %512 = vmatprep.mubr.bf16.mxu0 0
  %513 = vmatmul.mubr.bf16.gmra.mrb[0].mxu0 %v394
  %v514 = vpop.f32.mrb[0].mxu0
  %v515 = vadd.f32 %v422, %v514
  %v516 = vpop.f32.mrb[0].mxu0
  %v517 = vpop.f32.mrb[0].mxu0
  %v518 = vadd.f32 %v422, %v517
  %v519 = vpop.f32.mrb[0].mxu0
  %520 = vmatprep.mubr.bf16.mxu0 0
  %521 = vmatmul.mubr.bf16.gmra.mrb[0].mxu0 %v395
  %v522 = vpop.f32.mrb[0].mxu0
  %v523 = vadd.f32 %v422, %v522
  %v524 = vpop.f32.mrb[0].mxu0
  %v525 = vpop.f32.mrb[0].mxu0
  %v526 = vadd.f32 %v422, %v525
  %v527 = vpop.f32.mrb[0].mxu0
  %528 = vmatprep.mubr.bf16.mxu0 0
  %529 = vmatmul.mubr.bf16.gmra.mrb[0].mxu0 %v396
  %v530 = vpop.f32.mrb[0].mxu0
  %v531 = vadd.f32 %v422, %v530
  %v532 = vpop.f32.mrb[0].mxu0
  %v533 = vpop.f32.mrb[0].mxu0
  %v534 = vadd.f32 %v422, %v533
  %v535 = vpop.f32.mrb[0].mxu0
  %536 = vmatprep.mubr.bf16.mxu0 0
  %537 = vmatmul.mubr.bf16.gmra.mrb[0].mxu0 %v397
  %v538 = vpop.f32.mrb[0].mxu0
  %v539 = vadd.f32 %v422, %v538
  %v540 = vpop.f32.mrb[0].mxu0
  %v541 = vpop.f32.mrb[0].mxu0
  %v542 = vadd.f32 %v422, %v541
  %v543 = vpop.f32.mrb[0].mxu0
  %544 = vmatprep.mubr.bf16.mxu0 0
  %545 = vmatmul.mubr.bf16.gmra.mrb[0].mxu0 %v398
  %v546 = vpop.f32.mrb[0].mxu0
  %v547 = vadd.f32 %v422, %v546
  %v548 = vpop.f32.mrb[0].mxu0
  %v549 = vpop.f32.mrb[0].mxu0
  %v550 = vadd.f32 %v422, %v549
  %v551 = vpop.f32.mrb[0].mxu0
  %552 = vmatprep.mubr.bf16.mxu0 0
  %553 = vmatmul.mubr.bf16.gmra.mrb[0].mxu0 %v399
  %v554 = vpop.f32.mrb[0].mxu0
  %v555 = vadd.f32 %v422, %v554
  %v556 = vpop.f32.mrb[0].mxu0
  %v557 = vpop.f32.mrb[0].mxu0
  %v558 = vadd.f32 %v422, %v557
  %v559 = vpop.f32.mrb[0].mxu0
  %560 = vmatprep.mubr.bf16.mxu0 0
  %561 = vmatmul.mubr.bf16.gmra.mrb[0].mxu0 %v400
  %v562 = vpop.f32.mrb[0].mxu0
  %v563 = vadd.f32 %v422, %v562
  %v564 = vpop.f32.mrb[0].mxu0
  %v565 = vpop.f32.mrb[0].mxu0
  %v566 = vadd.f32 %v422, %v565
  %v567 = vpop.f32.mrb[0].mxu0
  %568 = vdwg.mxu0
  %569 = vst [vmem:[%s7] sm:$0xff] %v507
  %570 = vst [vmem:[%s7 + $0x8] sm:$0xff] %v510
  %571 = vst [vmem:[%s7 + $0x10] sm:$0xff] %v515
  %572 = vst [vmem:[%s7 + $0x18] sm:$0xff] %v518
  %573 = vst [vmem:[%s7 + $0x20] sm:$0xff] %v523
  %574 = vst [vmem:[%s7 + $0x28] sm:$0xff] %v526
  %575 = vst [vmem:[%s7 + $0x30] sm:$0xff] %v531
  %576 = vst [vmem:[%s7 + $0x38] sm:$0xff] %v534
  %577 = vst [vmem:[%s7 + $0x40] sm:$0xff] %v539
  %578 = vst [vmem:[%s7 + $0x48] sm:$0xff] %v542
  %579 = vst [vmem:[%s7 + $0x50] sm:$0xff] %v547
  %580 = vst [vmem:[%s7 + $0x58] sm:$0xff] %v550
  %581 = vst [vmem:[%s7 + $0x60] sm:$0xff] %v555
  %582 = vst [vmem:[%s7 + $0x68] sm:$0xff] %v558
  %583 = vst [vmem:[%s7 + $0x70] sm:$0xff] %v563
  %584 = vst [vmem:[%s7 + $0x78] sm:$0xff] %v566
  // Predicated region
  $region30: #{_forward_impl.4} parent=0 // pred_check
    _
  $region31: #{_forward_impl.4} parent=0 // pred_check_branch
    %586 = sbr.rel (0) target = $region33
  $region32: #{_forward_impl.4} parent=0 // pred_region
    _
  $region33: #{_forward_impl.4} parent=0 // pred_fallthru
    _
  // Predicated region
  $region34: #{_forward_impl.4} parent=0 // pred_check
    _
  $region35: #{_forward_impl.4} parent=0 // pred_check_branch
    %588 = sbr.rel (0) target = $region37
  $region36: #{_forward_impl.4} parent=0 // pred_region
    _
  $region37: #{_forward_impl.4} parent=0 // pred_fallthru
    _

</llo_original>
